<compile_context>
chip_gen: v6e
topology: v6e:2x2x1
jax: 0.10.0
libtpu: 0.0.40
codegen_flags: <defaults>
</compile_context>

<pallas_src>
import jax
import jax.numpy as jnp
from jax.experimental import pallas as pl
from jax.experimental.pallas import tpu as pltpu

SUBLANE = 8  # output rows are padded to a multiple of this (not to 128 lanes)


def dqn_kernel(x_ref, w1_ref, b1_ref, w2_ref, b2_ref, w3_ref, b3_ref, o_ref):
    # x_ref: (in_dim, tb) bf16, batch on the lane axis.  Weights are bf16 in
    # PyTorch (out, in) layout; matmuls accumulate in f32 on the MXU.
    h1 = jnp.dot(w1_ref[...], x_ref[...], preferred_element_type=jnp.float32)
    h1 = jnp.maximum(h1 + b1_ref[...], 0.0).astype(jnp.bfloat16)   # bias/ReLU in f32

    h2 = jnp.dot(w2_ref[...], h1, preferred_element_type=jnp.float32)
    h2 = jnp.maximum(h2 + b2_ref[...], 0.0).astype(jnp.bfloat16)

    h3 = jnp.dot(w3_ref[...], h2, preferred_element_type=jnp.float32)
    # (out_pad, tb) store: lane-dense over the batch, only 8 sublane rows.
    o_ref[...] = (h3 + b3_ref[...]).astype(o_ref.dtype)


def _pick_tb(batch, cap=4096):
    """Batch tile (lane axis): multiple of 128 (or == batch), >=2 blocks when possible."""
    if batch <= 128:
        return batch
    tb = (min(cap, batch) // 128) * 128
    if tb >= batch and batch >= 256:
        # Split into >= 2 blocks so both v7x TensorCores get work.
        tb = ((batch // 2 + 127) // 128) * 128
    return max(128, tb)


def dqn_forward(x, params, output_dim, *, tb_cap=4096):
    """Run the fused 3-layer MLP. x: (B, input_dim) f32. Returns (B, output_dim) f32."""
    w1, b1, w2, b2, w3, b3 = params
    B, in_dim = x.shape
    hidden = w1.shape[0]
    out_pad = w3.shape[0]   # output_dim rounded up to a multiple of 8 sublanes

    # Feature-major, bf16 input: batch on the lane axis -> dense, unmasked DMA.
    xt = x.astype(jnp.bfloat16).T   # (in_dim, B)

    tb = _pick_tb(B, tb_cap)
    grid = (pl.cdiv(B, tb),)
    const = lambda i: (0, 0)  # weights/biases: same block every step -> VMEM-resident

    out_t = pl.pallas_call(
        dqn_kernel,
        out_shape=jax.ShapeDtypeStruct((out_pad, B), jnp.float32),
        grid=grid,
        in_specs=[
            pl.BlockSpec((in_dim, tb), lambda i: (0, i)),   # x^T: tiled over batch lanes
            pl.BlockSpec((hidden, in_dim), const),          # w1 (out, in), bf16
            pl.BlockSpec((hidden, 1), const),               # b1 (out, 1), f32
            pl.BlockSpec((hidden, hidden), const),          # w2
            pl.BlockSpec((hidden, 1), const),               # b2
            pl.BlockSpec((out_pad, hidden), const),         # w3 (sublane-padded rows)
            pl.BlockSpec((out_pad, 1), const),              # b3
        ],
        out_specs=pl.BlockSpec((out_pad, tb), lambda i: (0, i)),
        compiler_params=pltpu.CompilerParams(
            dimension_semantics=("parallel",),              # dual-TC sharding on v7x
            vmem_limit_bytes=32 * 1024 * 1024,              # honest footprint + headroom
        ),
    )(xt, w1, b1, w2, b2, w3, b3)

    # Strip sublane padding and return batch-major Q-values.
    return out_t[:output_dim, :].T


def init_params(key, input_dim, output_dim, hidden=256, sub=SUBLANE):
    # PyTorch nn.Linear default init (uniform +/- 1/sqrt(fan_in)); weights kept in
    # native (out_features, in_features) layout, stored bf16; biases f32 columns.
    def linear(key, fan_in, fan_out):
        kw, kb = jax.random.split(key)
        bound = 1.0 / (fan_in ** 0.5)
        w = jax.random.uniform(kw, (fan_out, fan_in), jnp.float32, -bound, bound)
        b = jax.random.uniform(kb, (fan_out, 1), jnp.float32, -bound, bound)
        return w, b

    k1, k2, k3 = jax.random.split(key, 3)
    w1, b1 = linear(k1, input_dim, hidden)
    w2, b2 = linear(k2, hidden, hidden)
    w3, b3 = linear(k3, hidden, output_dim)

    # Sublane-pad the final layer rows (4 -> 8): cheap on HBM (2x, not 32x) and
    # keeps the output block 8-row aligned.
    out_pad = ((output_dim + sub - 1) // sub) * sub
    w3 = jnp.pad(w3, ((0, out_pad - output_dim), (0, 0)))
    b3 = jnp.pad(b3, ((0, out_pad - output_dim), (0, 0)))

    return (w1.astype(jnp.bfloat16), b1,
            w2.astype(jnp.bfloat16), b2,
            w3.astype(jnp.bfloat16), b3)


def ref_forward(x, params, output_dim):
    # Pure-JAX reference of the same math (same bf16 casts, f32 accumulation).
    w1, b1, w2, b2, w3, b3 = params
    h = x.astype(jnp.bfloat16)
    h = jnp.maximum(jnp.dot(h, w1.T, preferred_element_type=jnp.float32) + b1[:, 0], 0.0)
    h = h.astype(jnp.bfloat16)
    h = jnp.maximum(jnp.dot(h, w2.T, preferred_element_type=jnp.float32) + b2[:, 0], 0.0)
    h = h.astype(jnp.bfloat16)
    out = jnp.dot(h, w3.T, preferred_element_type=jnp.float32) + b3[:, 0]
    return out[:, :output_dim]


if __name__ == "__main__":
    # 2048 DQN: 4x4 board flattened -> 16 inputs, 4 actions.
    input_dim, output_dim = 16, 4

    key = jax.random.PRNGKey(0)
    kx, kp, kx2 = jax.random.split(key, 3)
    params = init_params(kp, input_dim, output_dim)

    # Small (launch-overhead-bound) case matching the original script's usage.
    x = jax.random.normal(kx, (8, input_dim), jnp.float32)
    out = dqn_forward(x, params, output_dim)
    jax.block_until_ready(out)
    ref = ref_forward(x, params, output_dim)
    assert out.shape == (8, output_dim)
    assert jnp.allclose(out, ref, atol=1e-3, rtol=1e-3)

    # Replay-buffer-style batch that is NOT a multiple of the tile: exercises the
    # partial last block and the multi-block (dual-TensorCore) grid path.
    x2 = jax.random.normal(kx2, (300, input_dim), jnp.float32)
    out2 = dqn_forward(x2, params, output_dim)
    jax.block_until_ready(out2)
    ref2 = ref_forward(x2, params, output_dim)
    assert out2.shape == (300, output_dim)
    assert jnp.allclose(out2, ref2, atol=1e-3, rtol=1e-3)

    print("KERNEL_OK")
</pallas_src>

<mosaic_0001>
module attributes {stable_mosaic.version = 11 : i64} {
  func.func @dqn_kernel(%arg0: i32, %arg1: memref<16x8xbf16, #tpu.memory_space<vmem>>, %arg2: memref<256x16xbf16, #tpu.memory_space<vmem>>, %arg3: memref<256x1xf32, #tpu.memory_space<vmem>>, %arg4: memref<256x256xbf16, #tpu.memory_space<vmem>>, %arg5: memref<256x1xf32, #tpu.memory_space<vmem>>, %arg6: memref<8x256xbf16, #tpu.memory_space<vmem>>, %arg7: memref<8x1xf32, #tpu.memory_space<vmem>>, %arg8: memref<8x8xf32, #tpu.memory_space<vmem>>) attributes {dimension_semantics = [#tpu.dimension_semantics<parallel>], iteration_bounds = array<i64: 1>, scalar_prefetch = 0 : i64, scratch_operands = 0 : i64, tpu.core_type = #tpu.core_type<tc>, window_params = [{transform_indices = @transform_0, window_bounds = array<i64: 16, 8>}, {pipeline_mode = #tpu.pipeline_mode<synchronous>, transform_indices = @transform_1, window_bounds = array<i64: 256, 16>}, {pipeline_mode = #tpu.pipeline_mode<synchronous>, transform_indices = @transform_2, window_bounds = array<i64: 256, 1>}, {pipeline_mode = #tpu.pipeline_mode<synchronous>, transform_indices = @transform_3, window_bounds = array<i64: 256, 256>}, {pipeline_mode = #tpu.pipeline_mode<synchronous>, transform_indices = @transform_4, window_bounds = array<i64: 256, 1>}, {pipeline_mode = #tpu.pipeline_mode<synchronous>, transform_indices = @transform_5, window_bounds = array<i64: 8, 256>}, {pipeline_mode = #tpu.pipeline_mode<synchronous>, transform_indices = @transform_6, window_bounds = array<i64: 8, 1>}, {transform_indices = @transform_7, window_bounds = array<i64: 8, 8>}]} {
    %c0 = arith.constant 0 : index
    %c0_0 = arith.constant 0 : index
    %0 = vector.load %arg2[%c0, %c0_0] : memref<256x16xbf16, #tpu.memory_space<vmem>>, vector<256x16xbf16>
    %c0_1 = arith.constant 0 : index
    %c0_2 = arith.constant 0 : index
    %1 = vector.load %arg1[%c0_1, %c0_2] : memref<16x8xbf16, #tpu.memory_space<vmem>>, vector<16x8xbf16>
    %cst = arith.constant dense<0.000000e+00> : vector<256x8xf32>
    %2 = tpu.matmul %0, %1, %cst {dimension_numbers = #tpu.dot_dimension_numbers<[1], [0], [0], [1], [0, 0, 1, 1], [], []>} : vector<256x16xbf16>, vector<16x8xbf16>, vector<256x8xf32> -> vector<256x8xf32>
    %c0_3 = arith.constant 0 : index
    %c0_4 = arith.constant 0 : index
    %3 = vector.load %arg3[%c0_3, %c0_4] : memref<256x1xf32, #tpu.memory_space<vmem>>, vector<256x1xf32>
    %4 = vector.broadcast %3 : vector<256x1xf32> to vector<256x8xf32>
    %5 = arith.addf %2, %4 : vector<256x8xf32>
    %cst_5 = arith.constant 0.000000e+00 : f32
    %6 = vector.broadcast %cst_5 : f32 to vector<256x8xf32>
    %7 = arith.maximumf %5, %6 : vector<256x8xf32>
    %8 = arith.truncf %7 : vector<256x8xf32> to vector<256x8xbf16>
    %c0_6 = arith.constant 0 : index
    %c0_7 = arith.constant 0 : index
    %9 = vector.load %arg4[%c0_6, %c0_7] : memref<256x256xbf16, #tpu.memory_space<vmem>>, vector<256x256xbf16>
    %cst_8 = arith.constant dense<0.000000e+00> : vector<256x8xf32>
    %10 = tpu.matmul %9, %8, %cst_8 {dimension_numbers = #tpu.dot_dimension_numbers<[1], [0], [0], [1], [0, 0, 1, 1], [], []>} : vector<256x256xbf16>, vector<256x8xbf16>, vector<256x8xf32> -> vector<256x8xf32>
    %c0_9 = arith.constant 0 : index
    %c0_10 = arith.constant 0 : index
    %11 = vector.load %arg5[%c0_9, %c0_10] : memref<256x1xf32, #tpu.memory_space<vmem>>, vector<256x1xf32>
    %12 = vector.broadcast %11 : vector<256x1xf32> to vector<256x8xf32>
    %13 = arith.addf %10, %12 : vector<256x8xf32>
    %cst_11 = arith.constant 0.000000e+00 : f32
    %14 = vector.broadcast %cst_11 : f32 to vector<256x8xf32>
    %15 = arith.maximumf %13, %14 : vector<256x8xf32>
    %16 = arith.truncf %15 : vector<256x8xf32> to vector<256x8xbf16>
    %c0_12 = arith.constant 0 : index
    %c0_13 = arith.constant 0 : index
    %17 = vector.load %arg6[%c0_12, %c0_13] : memref<8x256xbf16, #tpu.memory_space<vmem>>, vector<8x256xbf16>
    %cst_14 = arith.constant dense<0.000000e+00> : vector<8x8xf32>
    %18 = tpu.matmul %17, %16, %cst_14 {dimension_numbers = #tpu.dot_dimension_numbers<[1], [0], [0], [1], [0, 0, 1, 1], [], []>} : vector<8x256xbf16>, vector<256x8xbf16>, vector<8x8xf32> -> vector<8x8xf32>
    %c0_15 = arith.constant 0 : index
    %c0_16 = arith.constant 0 : index
    %19 = vector.load %arg7[%c0_15, %c0_16] : memref<8x1xf32, #tpu.memory_space<vmem>>, vector<8x1xf32>
    %20 = vector.broadcast %19 : vector<8x1xf32> to vector<8x8xf32>
    %21 = arith.addf %18, %20 : vector<8x8xf32>
    %c0_17 = arith.constant 0 : index
    %c0_18 = arith.constant 0 : index
    %22 = vector.load %arg8[%c0_17, %c0_18] : memref<8x8xf32, #tpu.memory_space<vmem>>, vector<8x8xf32>
    tpu.vector_store %arg8[%c0_17, %c0_18], %21 {strides = array<i32>} : memref<8x8xf32, #tpu.memory_space<vmem>>, vector<8x8xf32>,
    return
  }
  func.func @transform_0(%arg0: i32) -> (i32, i32) {
    %c0_i32 = arith.constant 0 : i32
    %c0_i32_0 = arith.constant 0 : i32
    return %c0_i32, %arg0 : i32, i32
  }
  func.func @transform_1(%arg0: i32) -> (i32, i32) {
    %c0_i32 = arith.constant 0 : i32
    %c0_i32_0 = arith.constant 0 : i32
    %c0_i32_1 = arith.constant 0 : i32
    return %c0_i32, %c0_i32_0 : i32, i32
  }
  func.func @transform_2(%arg0: i32) -> (i32, i32) {
    %c0_i32 = arith.constant 0 : i32
    %c0_i32_0 = arith.constant 0 : i32
    %c0_i32_1 = arith.constant 0 : i32
    return %c0_i32, %c0_i32_0 : i32, i32
  }
  func.func @transform_3(%arg0: i32) -> (i32, i32) {
    %c0_i32 = arith.constant 0 : i32
    %c0_i32_0 = arith.constant 0 : i32
    %c0_i32_1 = arith.constant 0 : i32
    return %c0_i32, %c0_i32_0 : i32, i32
  }
  func.func @transform_4(%arg0: i32) -> (i32, i32) {
    %c0_i32 = arith.constant 0 : i32
    %c0_i32_0 = arith.constant 0 : i32
    %c0_i32_1 = arith.constant 0 : i32
    return %c0_i32, %c0_i32_0 : i32, i32
  }
  func.func @transform_5(%arg0: i32) -> (i32, i32) {
    %c0_i32 = arith.constant 0 : i32
    %c0_i32_0 = arith.constant 0 : i32
    %c0_i32_1 = arith.constant 0 : i32
    return %c0_i32, %c0_i32_0 : i32, i32
  }
  func.func @transform_6(%arg0: i32) -> (i32, i32) {
    %c0_i32 = arith.constant 0 : i32
    %c0_i32_0 = arith.constant 0 : i32
    %c0_i32_1 = arith.constant 0 : i32
    return %c0_i32, %c0_i32_0 : i32, i32
  }
  func.func @transform_7(%arg0: i32) -> (i32, i32) {
    %c0_i32 = arith.constant 0 : i32
    %c0_i32_0 = arith.constant 0 : i32
    return %c0_i32, %arg0 : i32, i32
  }
}

</mosaic_0001>

<llo_original>
// kernel: tpu_custom_call.1
$region0: #{tpu_custom_call.1}
  #allocation0 [shape = 'u32[]', space=smem, size = 0x4, offset = 0x4, fixed_abs, tag = 'smem constant byte address 0x4 - core index']
  #allocation1 [shape = 'u32[144,128]{1,0:T(1,128)}', space=vmem, size = 0x12000, scoped, tag = 'internal scratch']
  %s0 = inlined_call_operand.vmem [shape: bf16[16,8], index: 0, kind: input, shape index: {}]
  %s1 = inlined_call_operand.vmem [shape: bf16[256,16], index: 1, kind: input, shape index: {}]
  %s2 = inlined_call_operand.vmem [shape: f32[256,1], index: 2, kind: input, shape index: {}]
  %s3 = inlined_call_operand.vmem [shape: bf16[256,256], index: 3, kind: input, shape index: {}]
  %s4 = inlined_call_operand.vmem [shape: f32[256,1], index: 4, kind: input, shape index: {}]
  %s5 = inlined_call_operand.vmem [shape: bf16[8,256], index: 5, kind: input, shape index: {}]
  %s6 = inlined_call_operand.vmem [shape: f32[8,1], index: 6, kind: input, shape index: {}]
  %s7 = inlined_call_operand.hbm [shape: f32[8,8], index: 7, kind: output, shape index: {}]
  %s8 = sld [smem:[#allocation0]]
  $region38: #{tpu_custom_call.1} parent=0
    _
  %s10 = ssub.s32 1, %s8
  %s11 = scalar_select 0, %s10, %s8
  $region1: #{tpu_custom_call.1} parent=0
    #allocation2 [shape = 'u8[4096]{0}', space=vmem, size = 0x1000, scoped, tag = 'output window, operand 0, single buffered']
    #allocation3 [shape = 's32[1]{0}', space=sflag, size = 0x4, scoped, tag = 'scoped memory for tpu_custom_call.1']
    %12 = vsyncpa [#allocation3], 0
    // Predicated region
    $region2: #{tpu_custom_call.1} parent=1 // pred_check
      _
    $region3: #{tpu_custom_call.1} parent=1 // pred_check_branch
      %14 = sbr.rel (0) target = $region5
    $region4: #{tpu_custom_call.1} parent=1 // pred_region
      _
    $region5: #{tpu_custom_call.1} parent=1 // pred_fallthru
      _
    // Predicated region
    $region6: #{tpu_custom_call.1} parent=1 // pred_check
      _
    $region7: #{tpu_custom_call.1} parent=1 // pred_check_branch
      %16 = sbr.rel (0) target = $region9
    $region8: #{tpu_custom_call.1} parent=1 // pred_region
      _
    $region9: #{tpu_custom_call.1} parent=1 // pred_fallthru
      _
    // Predicated region
    $region10: #{tpu_custom_call.1} parent=1 // pred_check
      _
    $region11: #{tpu_custom_call.1} parent=1 // pred_check_branch
      %18 = sbr.rel (0) target = $region13
    $region12: #{tpu_custom_call.1} parent=1 // pred_region
      _
    $region13: #{tpu_custom_call.1} parent=1 // pred_fallthru
      _
    // Predicated region
    $region14: #{tpu_custom_call.1} parent=1 // pred_check
      _
    $region15: #{tpu_custom_call.1} parent=1 // pred_check_branch
      %20 = sbr.rel (0) target = $region17
    $region16: #{tpu_custom_call.1} parent=1 // pred_region
      _
    $region17: #{tpu_custom_call.1} parent=1 // pred_fallthru
      _
    // Predicated region
    $region18: #{tpu_custom_call.1} parent=1 // pred_check
      _
    $region19: #{tpu_custom_call.1} parent=1 // pred_check_branch
      %22 = sbr.rel (0) target = $region21
    $region20: #{tpu_custom_call.1} parent=1 // pred_region
      _
    $region21: #{tpu_custom_call.1} parent=1 // pred_fallthru
      _
    // Predicated region
    $region22: #{tpu_custom_call.1} parent=1 // pred_check
      _
    $region23: #{tpu_custom_call.1} parent=1 // pred_check_branch
      %24 = sbr.rel (0) target = $region25
    $region24: #{tpu_custom_call.1} parent=1 // pred_region
      _
    $region25: #{tpu_custom_call.1} parent=1 // pred_fallthru
      _
    // Predicated region
    $region26: #{tpu_custom_call.1} parent=1 // pred_check
      _
    $region27: #{tpu_custom_call.1} parent=1 // pred_check_branch
      %26 = sbr.rel (0) target = $region29
    $region28: #{tpu_custom_call.1} parent=1 // pred_region
      _
    $region29: #{tpu_custom_call.1} parent=1 // pred_fallthru
      _
    %v28 = vld [vmem:[%s1] sm:$0xf]
    %v29 = vld [vmem:[%s1 + $0x4] sm:$0xf]
    %v30 = vld [vmem:[%s1 + $0x8] sm:$0xf]
    %v31 = vld [vmem:[%s1 + $0xc] sm:$0xf]
    %v32 = vld [vmem:[%s1 + $0x10] sm:$0xf]
    %v33 = vld [vmem:[%s1 + $0x14] sm:$0xf]
    %v34 = vld [vmem:[%s1 + $0x18] sm:$0xf]
    %v35 = vld [vmem:[%s1 + $0x1c] sm:$0xf]
    %v36 = vld [vmem:[%s1 + $0x20] sm:$0xf]
    %v37 = vld [vmem:[%s1 + $0x24] sm:$0xf]
    %v38 = vld [vmem:[%s1 + $0x28] sm:$0xf]
    %v39 = vld [vmem:[%s1 + $0x2c] sm:$0xf]
    %v40 = vld [vmem:[%s1 + $0x30] sm:$0xf]
    %v41 = vld [vmem:[%s1 + $0x34] sm:$0xf]
    %v42 = vld [vmem:[%s1 + $0x38] sm:$0xf]
    %v43 = vld [vmem:[%s1 + $0x3c] sm:$0xf]
    %v44 = vld [vmem:[%s1 + $0x40] sm:$0xf]
    %v45 = vld [vmem:[%s1 + $0x44] sm:$0xf]
    %v46 = vld [vmem:[%s1 + $0x48] sm:$0xf]
    %v47 = vld [vmem:[%s1 + $0x4c] sm:$0xf]
    %v48 = vld [vmem:[%s1 + $0x50] sm:$0xf]
    %v49 = vld [vmem:[%s1 + $0x54] sm:$0xf]
    %v50 = vld [vmem:[%s1 + $0x58] sm:$0xf]
    %v51 = vld [vmem:[%s1 + $0x5c] sm:$0xf]
    %v52 = vld [vmem:[%s1 + $0x60] sm:$0xf]
    %v53 = vld [vmem:[%s1 + $0x64] sm:$0xf]
    %v54 = vld [vmem:[%s1 + $0x68] sm:$0xf]
    %v55 = vld [vmem:[%s1 + $0x6c] sm:$0xf]
    %v56 = vld [vmem:[%s1 + $0x70] sm:$0xf]
    %v57 = vld [vmem:[%s1 + $0x74] sm:$0xf]
    %v58 = vld [vmem:[%s1 + $0x78] sm:$0xf]
    %v59 = vld [vmem:[%s1 + $0x7c] sm:$0xf]
    %v60 = vld [vmem:[%s0] sm:$0xf]
    %v61 = vld [vmem:[%s0 + $0x4] sm:$0xf]
    %v62 = vld [vmem:[%s2] sm:$0xff]
    %v63 = vld [vmem:[%s2 + $0x8] sm:$0xff]
    %v64 = vld [vmem:[%s2 + $0x10] sm:$0xff]
    %v65 = vld [vmem:[%s2 + $0x18] sm:$0xff]
    %v66 = vld [vmem:[%s2 + $0x20] sm:$0xff]
    %v67 = vld [vmem:[%s2 + $0x28] sm:$0xff]
    %v68 = vld [vmem:[%s2 + $0x30] sm:$0xff]
    %v69 = vld [vmem:[%s2 + $0x38] sm:$0xff]
    %v70 = vld [vmem:[%s2 + $0x40] sm:$0xff]
    %v71 = vld [vmem:[%s2 + $0x48] sm:$0xff]
    %v72 = vld [vmem:[%s2 + $0x50] sm:$0xff]
    %v73 = vld [vmem:[%s2 + $0x58] sm:$0xff]
    %v74 = vld [vmem:[%s2 + $0x60] sm:$0xff]
    %v75 = vld [vmem:[%s2 + $0x68] sm:$0xff]
    %v76 = vld [vmem:[%s2 + $0x70] sm:$0xff]
    %v77 = vld [vmem:[%s2 + $0x78] sm:$0xff]
    %v78 = vld [vmem:[%s2 + $0x80] sm:$0xff]
    %v79 = vld [vmem:[%s2 + $0x88] sm:$0xff]
    %v80 = vld [vmem:[%s2 + $0x90] sm:$0xff]
    %v81 = vld [vmem:[%s2 + $0x98] sm:$0xff]
    %v82 = vld [vmem:[%s2 + $0xa0] sm:$0xff]
    %v83 = vld [vmem:[%s2 + $0xa8] sm:$0xff]
    %v84 = vld [vmem:[%s2 + $0xb0] sm:$0xff]
    %v85 = vld [vmem:[%s2 + $0xb8] sm:$0xff]
    %v86 = vld [vmem:[%s2 + $0xc0] sm:$0xff]
    %v87 = vld [vmem:[%s2 + $0xc8] sm:$0xff]
    %v88 = vld [vmem:[%s2 + $0xd0] sm:$0xff]
    %v89 = vld [vmem:[%s2 + $0xd8] sm:$0xff]
    %v90 = vld [vmem:[%s2 + $0xe0] sm:$0xff]
    %v91 = vld [vmem:[%s2 + $0xe8] sm:$0xff]
    %v92 = vld [vmem:[%s2 + $0xf0] sm:$0xff]
    %v93 = vld [vmem:[%s2 + $0xf8] sm:$0xff]
    %95 = vset.pattern.permute.xlu0 0
    %96 = vperm.xlu0 %95, %v62
    %v97 = vpop.permute.xlu0 %96
    %100 = vset.pattern.permute.xlu0 0
    %101 = vperm.xlu0 %100, %v63
    %v102 = vpop.permute.xlu0 %101
    %105 = vset.pattern.permute.xlu0 0
    %106 = vperm.xlu0 %105, %v64
    %v107 = vpop.permute.xlu0 %106
    %110 = vset.pattern.permute.xlu0 0
    %111 = vperm.xlu0 %110, %v65
    %v112 = vpop.permute.xlu0 %111
    %115 = vset.pattern.permute.xlu0 0
    %116 = vperm.xlu0 %115, %v66
    %v117 = vpop.permute.xlu0 %116
    %120 = vset.pattern.permute.xlu0 0
    %121 = vperm.xlu0 %120, %v67
    %v122 = vpop.permute.xlu0 %121
    %125 = vset.pattern.permute.xlu0 0
    %126 = vperm.xlu0 %125, %v68
    %v127 = vpop.permute.xlu0 %126
    %130 = vset.pattern.permute.xlu0 0
    %131 = vperm.xlu0 %130, %v69
    %v132 = vpop.permute.xlu0 %131
    %135 = vset.pattern.permute.xlu0 0
    %136 = vperm.xlu0 %135, %v70
    %v137 = vpop.permute.xlu0 %136
    %140 = vset.pattern.permute.xlu0 0
    %141 = vperm.xlu0 %140, %v71
    %v142 = vpop.permute.xlu0 %141
    %145 = vset.pattern.permute.xlu0 0
    %146 = vperm.xlu0 %145, %v72
    %v147 = vpop.permute.xlu0 %146
    %150 = vset.pattern.permute.xlu0 0
    %151 = vperm.xlu0 %150, %v73
    %v152 = vpop.permute.xlu0 %151
    %155 = vset.pattern.permute.xlu0 0
    %156 = vperm.xlu0 %155, %v74
    %v157 = vpop.permute.xlu0 %156
    %160 = vset.pattern.permute.xlu0 0
    %161 = vperm.xlu0 %160, %v75
    %v162 = vpop.permute.xlu0 %161
    %165 = vset.pattern.permute.xlu0 0
    %166 = vperm.xlu0 %165, %v76
    %v167 = vpop.permute.xlu0 %166
    %170 = vset.pattern.permute.xlu0 0
    %171 = vperm.xlu0 %170, %v77
    %v172 = vpop.permute.xlu0 %171
    %175 = vset.pattern.permute.xlu0 0
    %176 = vperm.xlu0 %175, %v78
    %v177 = vpop.permute.xlu0 %176
    %180 = vset.pattern.permute.xlu0 0
    %181 = vperm.xlu0 %180, %v79
    %v182 = vpop.permute.xlu0 %181
    %185 = vset.pattern.permute.xlu0 0
    %186 = vperm.xlu0 %185, %v80
    %v187 = vpop.permute.xlu0 %186
    %190 = vset.pattern.permute.xlu0 0
    %191 = vperm.xlu0 %190, %v81
    %v192 = vpop.permute.xlu0 %191
    %195 = vset.pattern.permute.xlu0 0
    %196 = vperm.xlu0 %195, %v82
    %v197 = vpop.permute.xlu0 %196
    %200 = vset.pattern.permute.xlu0 0
    %201 = vperm.xlu0 %200, %v83
    %v202 = vpop.permute.xlu0 %201
    %205 = vset.pattern.permute.xlu0 0
    %206 = vperm.xlu0 %205, %v84
    %v207 = vpop.permute.xlu0 %206
    %210 = vset.pattern.permute.xlu0 0
    %211 = vperm.xlu0 %210, %v85
    %v212 = vpop.permute.xlu0 %211
    %215 = vset.pattern.permute.xlu0 0
    %216 = vperm.xlu0 %215, %v86
    %v217 = vpop.permute.xlu0 %216
    %220 = vset.pattern.permute.xlu0 0
    %221 = vperm.xlu0 %220, %v87
    %v222 = vpop.permute.xlu0 %221
    %225 = vset.pattern.permute.xlu0 0
    %226 = vperm.xlu0 %225, %v88
    %v227 = vpop.permute.xlu0 %226
    %230 = vset.pattern.permute.xlu0 0
    %231 = vperm.xlu0 %230, %v89
    %v232 = vpop.permute.xlu0 %231
    %235 = vset.pattern.permute.xlu0 0
    %236 = vperm.xlu0 %235, %v90
    %v237 = vpop.permute.xlu0 %236
    %240 = vset.pattern.permute.xlu0 0
    %241 = vperm.xlu0 %240, %v91
    %v242 = vpop.permute.xlu0 %241
    %245 = vset.pattern.permute.xlu0 0
    %246 = vperm.xlu0 %245, %v92
    %v247 = vpop.permute.xlu0 %246
    %250 = vset.pattern.permute.xlu0 0
    %251 = vperm.xlu0 %250, %v93
    %v252 = vpop.permute.xlu0 %251
    %v286 = vunpack.c.l.b16 %v28
    %v287 = vunpack.c.l.b16 %v29
    %v288 = vunpack.c.l.b16 %v30
    %v289 = vunpack.c.l.b16 %v31
    %v290 = vunpack.c.l.b16 %v32
    %v291 = vunpack.c.l.b16 %v33
    %v292 = vunpack.c.l.b16 %v34
    %v293 = vunpack.c.l.b16 %v35
    %v294 = vunpack.c.l.b16 %v36
    %v295 = vunpack.c.l.b16 %v37
    %v296 = vunpack.c.l.b16 %v38
    %v297 = vunpack.c.l.b16 %v39
    %v298 = vunpack.c.l.b16 %v40
    %v299 = vunpack.c.l.b16 %v41
    %v300 = vunpack.c.l.b16 %v42
    %v301 = vunpack.c.l.b16 %v43
    %v302 = vunpack.c.l.b16 %v44
    %v303 = vunpack.c.l.b16 %v45
    %v304 = vunpack.c.l.b16 %v46
    %v305 = vunpack.c.l.b16 %v47
    %v306 = vunpack.c.l.b16 %v48
    %v307 = vunpack.c.l.b16 %v49
    %v308 = vunpack.c.l.b16 %v50
    %v309 = vunpack.c.l.b16 %v51
    %v310 = vunpack.c.l.b16 %v52
    %v311 = vunpack.c.l.b16 %v53
    %v312 = vunpack.c.l.b16 %v54
    %v313 = vunpack.c.l.b16 %v55
    %v314 = vunpack.c.l.b16 %v56
    %v315 = vunpack.c.l.b16 %v57
    %v316 = vunpack.c.l.b16 %v58
    %v317 = vunpack.c.l.b16 %v59
    %v318 = vpack.c.b16 %v287, %v286
    %v319 = vpack.c.b16 %v289, %v288
    %v320 = vpack.c.b16 %v291, %v290
    %v321 = vpack.c.b16 %v293, %v292
    %v322 = vpack.c.b16 %v295, %v294
    %v323 = vpack.c.b16 %v297, %v296
    %v324 = vpack.c.b16 %v299, %v298
    %v325 = vpack.c.b16 %v301, %v300
    %v326 = vpack.c.b16 %v303, %v302
    %v327 = vpack.c.b16 %v305, %v304
    %v328 = vpack.c.b16 %v307, %v306
    %v329 = vpack.c.b16 %v309, %v308
    %v330 = vpack.c.b16 %v311, %v310
    %v331 = vpack.c.b16 %v313, %v312
    %v332 = vpack.c.b16 %v315, %v314
    %v333 = vpack.c.b16 %v317, %v316
    %v336 = vunpack.c.l.b16 %v60
    %v337 = vunpack.c.l.b16 %v61
    %v338 = vpack.c.b16 %v337, %v336
    %vm340 = vcmask 130048
    %v342 = vsel %vm340, %v318, 0
    %v345 = vsel %vm340, %v319, 0
    %v348 = vsel %vm340, %v320, 0
    %v351 = vsel %vm340, %v321, 0
    %v354 = vsel %vm340, %v322, 0
    %v357 = vsel %vm340, %v323, 0
    %v360 = vsel %vm340, %v324, 0
    %v363 = vsel %vm340, %v325, 0
    %v366 = vsel %vm340, %v326, 0
    %v369 = vsel %vm340, %v327, 0
    %v372 = vsel %vm340, %v328, 0
    %v375 = vsel %vm340, %v329, 0
    %v378 = vsel %vm340, %v330, 0
    %v381 = vsel %vm340, %v331, 0
    %v384 = vsel %vm340, %v332, 0
    %v387 = vsel %vm340, %v333, 0
    %389 = vmatprep.subr.bf16.mxu0 0
    %390 = vmatpush1.bf16.msra.mxu0 0
    %391 = vmatprep.subr.bf16.mxu0 0
    %392 = vmatpush1.bf16.msra.mxu0 0
    %393 = vmatprep.subr.bf16.mxu0 0
    %394 = vmatpush1.bf16.msra.mxu0 0
    %395 = vmatprep.subr.bf16.mxu0 0
    %396 = vmatpush1.bf16.msra.mxu0 0
    %397 = vmatprep.subr.bf16.mxu0 0
    %398 = vmatpush1.bf16.msra.mxu0 0
    %399 = vmatprep.subr.bf16.mxu0 0
    %400 = vmatpush1.bf16.msra.mxu0 0
    %401 = vmatprep.subr.bf16.mxu0 0
    %402 = vmatpush1.bf16.msra.mxu0 0
    %403 = vmatprep.subr.bf16.mxu0 0
    %404 = vmatpush1.bf16.msra.mxu0 %v338
    %405 = vmatprep.subr.bf16.mxu0 0
    %406 = vmatpush2.bf16.msra.mxu0 0
    %407 = vmatprep.subr.bf16.mxu0 0
    %408 = vmatpush2.bf16.msra.mxu0 0
    %409 = vmatprep.subr.bf16.mxu0 0
    %410 = vmatpush2.bf16.msra.mxu0 0
    %411 = vmatprep.subr.bf16.mxu0 0
    %412 = vmatpush2.bf16.msra.mxu0 0
    %413 = vmatprep.subr.bf16.mxu0 0
    %414 = vmatpush2.bf16.msra.mxu0 0
    %415 = vmatprep.subr.bf16.mxu0 0
    %416 = vmatpush2.bf16.msra.mxu0 0
    %417 = vmatprep.subr.bf16.mxu0 0
    %418 = vmatpush2.bf16.msra.mxu0 0
    %419 = vmatprep.subr.bf16.mxu0 0
    %420 = vmatpush2.bf16.msra.mxu0 0
    %421 = vmatprep.mubr.bf16.mxu0 0
    %422 = vmatmul.mubr.bf16.gmra.mxu0 %v342
    %v423 = vpop.f32.mrf.mxu0
    %v424 = vadd.f32 %v97, %v423
    %v425 = vpop.f32.mrf.mxu0
    %v426 = vpop.f32.mrf.mxu0
    %v427 = vadd.f32 %v102, %v426
    %v428 = vpop.f32.mrf.mxu0
    %429 = vmatprep.mubr.bf16.mxu0 0
    %430 = vmatmul.mubr.bf16.gmra.mxu0 %v345
    %v431 = vpop.f32.mrf.mxu0
    %v432 = vadd.f32 %v107, %v431
    %v433 = vpop.f32.mrf.mxu0
    %v434 = vpop.f32.mrf.mxu0
    %v435 = vadd.f32 %v112, %v434
    %v436 = vpop.f32.mrf.mxu0
    %437 = vmatprep.mubr.bf16.mxu0 0
    %438 = vmatmul.mubr.bf16.gmra.mxu0 %v348
    %v439 = vpop.f32.mrf.mxu0
    %v440 = vadd.f32 %v117, %v439
    %v441 = vpop.f32.mrf.mxu0
    %v442 = vpop.f32.mrf.mxu0
    %v443 = vadd.f32 %v122, %v442
    %v444 = vpop.f32.mrf.mxu0
    %445 = vmatprep.mubr.bf16.mxu0 0
    %446 = vmatmul.mubr.bf16.gmra.mxu0 %v351
    %v447 = vpop.f32.mrf.mxu0
    %v448 = vadd.f32 %v127, %v447
    %v449 = vpop.f32.mrf.mxu0
    %v450 = vpop.f32.mrf.mxu0
    %v451 = vadd.f32 %v132, %v450
    %v452 = vpop.f32.mrf.mxu0
    %453 = vmatprep.mubr.bf16.mxu0 0
    %454 = vmatmul.mubr.bf16.gmra.mxu0 %v354
    %v455 = vpop.f32.mrf.mxu0
    %v456 = vadd.f32 %v137, %v455
    %v457 = vpop.f32.mrf.mxu0
    %v458 = vpop.f32.mrf.mxu0
    %v459 = vadd.f32 %v142, %v458
    %v460 = vpop.f32.mrf.mxu0
    %461 = vmatprep.mubr.bf16.mxu0 0
    %462 = vmatmul.mubr.bf16.gmra.mxu0 %v357
    %v463 = vpop.f32.mrf.mxu0
    %v464 = vadd.f32 %v147, %v463
    %v465 = vpop.f32.mrf.mxu0
    %v466 = vpop.f32.mrf.mxu0
    %v467 = vadd.f32 %v152, %v466
    %v468 = vpop.f32.mrf.mxu0
    %469 = vmatprep.mubr.bf16.mxu0 0
    %470 = vmatmul.mubr.bf16.gmra.mxu0 %v360
    %v471 = vpop.f32.mrf.mxu0
    %v472 = vadd.f32 %v157, %v471
    %v473 = vpop.f32.mrf.mxu0
    %v474 = vpop.f32.mrf.mxu0
    %v475 = vadd.f32 %v162, %v474
    %v476 = vpop.f32.mrf.mxu0
    %477 = vmatprep.mubr.bf16.mxu0 0
    %478 = vmatmul.mubr.bf16.gmra.mxu0 %v363
    %v479 = vpop.f32.mrf.mxu0
    %v480 = vadd.f32 %v167, %v479
    %v481 = vpop.f32.mrf.mxu0
    %v482 = vpop.f32.mrf.mxu0
    %v483 = vadd.f32 %v172, %v482
    %v484 = vpop.f32.mrf.mxu0
    %485 = vmatprep.mubr.bf16.mxu0 0
    %486 = vmatmul.mubr.bf16.gmra.mxu0 %v366
    %v487 = vpop.f32.mrf.mxu0
    %v488 = vadd.f32 %v177, %v487
    %v489 = vpop.f32.mrf.mxu0
    %v490 = vpop.f32.mrf.mxu0
    %v491 = vadd.f32 %v182, %v490
    %v492 = vpop.f32.mrf.mxu0
    %493 = vmatprep.mubr.bf16.mxu0 0
    %494 = vmatmul.mubr.bf16.gmra.mxu0 %v369
    %v495 = vpop.f32.mrf.mxu0
    %v496 = vadd.f32 %v187, %v495
    %v497 = vpop.f32.mrf.mxu0
    %v498 = vpop.f32.mrf.mxu0
    %v499 = vadd.f32 %v192, %v498
    %v500 = vpop.f32.mrf.mxu0
    %501 = vmatprep.mubr.bf16.mxu0 0
    %502 = vmatmul.mubr.bf16.gmra.mxu0 %v372
    %v503 = vpop.f32.mrf.mxu0
    %v504 = vadd.f32 %v197, %v503
    %v505 = vpop.f32.mrf.mxu0
    %v506 = vpop.f32.mrf.mxu0
    %v507 = vadd.f32 %v202, %v506
    %v508 = vpop.f32.mrf.mxu0
    %509 = vmatprep.mubr.bf16.mxu0 0
    %510 = vmatmul.mubr.bf16.gmra.mxu0 %v375
    %v511 = vpop.f32.mrf.mxu0
    %v512 = vadd.f32 %v207, %v511
    %v513 = vpop.f32.mrf.mxu0
    %v514 = vpop.f32.mrf.mxu0
    %v515 = vadd.f32 %v212, %v514
    %v516 = vpop.f32.mrf.mxu0
    %517 = vmatprep.mubr.bf16.mxu0 0
    %518 = vmatmul.mubr.bf16.gmra.mxu0 %v378
    %v519 = vpop.f32.mrf.mxu0
    %v520 = vadd.f32 %v217, %v519
    %v521 = vpop.f32.mrf.mxu0
    %v522 = vpop.f32.mrf.mxu0
    %v523 = vadd.f32 %v222, %v522
    %v524 = vpop.f32.mrf.mxu0
    %525 = vmatprep.mubr.bf16.mxu0 0
    %526 = vmatmul.mubr.bf16.gmra.mxu0 %v381
    %v527 = vpop.f32.mrf.mxu0
    %v528 = vadd.f32 %v227, %v527
    %v529 = vpop.f32.mrf.mxu0
    %v530 = vpop.f32.mrf.mxu0
    %v531 = vadd.f32 %v232, %v530
    %v532 = vpop.f32.mrf.mxu0
    %533 = vmatprep.mubr.bf16.mxu0 0
    %534 = vmatmul.mubr.bf16.gmra.mxu0 %v384
    %v535 = vpop.f32.mrf.mxu0
    %v536 = vadd.f32 %v237, %v535
    %v537 = vpop.f32.mrf.mxu0
    %v538 = vpop.f32.mrf.mxu0
    %v539 = vadd.f32 %v242, %v538
    %v540 = vpop.f32.mrf.mxu0
    %541 = vmatprep.mubr.bf16.mxu0 0
    %542 = vmatmul.mubr.bf16.gmra.mxu0 %v387
    %v543 = vpop.f32.mrf.mxu0
    %v544 = vadd.f32 %v247, %v543
    %v545 = vpop.f32.mrf.mxu0
    %v546 = vpop.f32.mrf.mxu0
    %v547 = vadd.f32 %v252, %v546
    %v548 = vpop.f32.mrf.mxu0
    %549 = vdwg.mxu0
    %v550 = vmax.f32 %v424, 0.0
    %v551 = vmax.f32 %v427, 0.0
    %v552 = vmax.f32 %v432, 0.0
    %v553 = vmax.f32 %v435, 0.0
    %v554 = vmax.f32 %v440, 0.0
    %v555 = vmax.f32 %v443, 0.0
    %v556 = vmax.f32 %v448, 0.0
    %v557 = vmax.f32 %v451, 0.0
    %v558 = vmax.f32 %v456, 0.0
    %v559 = vmax.f32 %v459, 0.0
    %v560 = vmax.f32 %v464, 0.0
    %v561 = vmax.f32 %v467, 0.0
    %v562 = vmax.f32 %v472, 0.0
    %v563 = vmax.f32 %v475, 0.0
    %v564 = vmax.f32 %v480, 0.0
    %v565 = vmax.f32 %v483, 0.0
    %v566 = vmax.f32 %v488, 0.0
    %v567 = vmax.f32 %v491, 0.0
    %v568 = vmax.f32 %v496, 0.0
    %v569 = vmax.f32 %v499, 0.0
    %v570 = vmax.f32 %v504, 0.0
    %v571 = vmax.f32 %v507, 0.0
    %v572 = vmax.f32 %v512, 0.0
    %v573 = vmax.f32 %v515, 0.0
    %v574 = vmax.f32 %v520, 0.0
    %v575 = vmax.f32 %v523, 0.0
    %v576 = vmax.f32 %v528, 0.0
    %v577 = vmax.f32 %v531, 0.0
    %v578 = vmax.f32 %v536, 0.0
    %v579 = vmax.f32 %v539, 0.0
    %v580 = vmax.f32 %v544, 0.0
    %v581 = vmax.f32 %v547, 0.0
    %v582 = vpack.c.bf16 %v551, %v550
    %v583 = vpack.c.bf16 %v553, %v552
    %v584 = vpack.c.bf16 %v555, %v554
    %v585 = vpack.c.bf16 %v557, %v556
    %v586 = vpack.c.bf16 %v559, %v558
    %v587 = vpack.c.bf16 %v561, %v560
    %v588 = vpack.c.bf16 %v563, %v562
    %v589 = vpack.c.bf16 %v565, %v564
    %v590 = vpack.c.bf16 %v567, %v566
    %v591 = vpack.c.bf16 %v569, %v568
    %v592 = vpack.c.bf16 %v571, %v570
    %v593 = vpack.c.bf16 %v573, %v572
    %v594 = vpack.c.bf16 %v575, %v574
    %v595 = vpack.c.bf16 %v577, %v576
    %v596 = vpack.c.bf16 %v579, %v578
    %v597 = vpack.c.bf16 %v581, %v580
    %v598 = vld [vmem:[%s3] sm:$0xff]
    %v599 = vld [vmem:[%s3 + $0x8] sm:$0xff]
    %v600 = vld [vmem:[%s3 + $0x10] sm:$0xff]
    %v601 = vld [vmem:[%s3 + $0x18] sm:$0xff]
    %v602 = vld [vmem:[%s3 + $0x20] sm:$0xff]
    %v603 = vld [vmem:[%s3 + $0x28] sm:$0xff]
    %v604 = vld [vmem:[%s3 + $0x30] sm:$0xff]
    %v605 = vld [vmem:[%s3 + $0x38] sm:$0xff]
    %v606 = vld [vmem:[%s3 + $0x40] sm:$0xff]
    %v607 = vld [vmem:[%s3 + $0x48] sm:$0xff]
    %v608 = vld [vmem:[%s3 + $0x50] sm:$0xff]
    %v609 = vld [vmem:[%s3 + $0x58] sm:$0xff]
    %v610 = vld [vmem:[%s3 + $0x60] sm:$0xff]
    %v611 = vld [vmem:[%s3 + $0x68] sm:$0xff]
    %v612 = vld [vmem:[%s3 + $0x70] sm:$0xff]
    %v613 = vld [vmem:[%s3 + $0x78] sm:$0xff]
    %v614 = vld [vmem:[%s3 + $0x80] sm:$0xff]
    %v615 = vld [vmem:[%s3 + $0x88] sm:$0xff]
    %v616 = vld [vmem:[%s3 + $0x90] sm:$0xff]
    %v617 = vld [vmem:[%s3 + $0x98] sm:$0xff]
    %v618 = vld [vmem:[%s3 + $0xa0] sm:$0xff]
    %v619 = vld [vmem:[%s3 + $0xa8] sm:$0xff]
    %v620 = vld [vmem:[%s3 + $0xb0] sm:$0xff]
    %v621 = vld [vmem:[%s3 + $0xb8] sm:$0xff]
    %v622 = vld [vmem:[%s3 + $0xc0] sm:$0xff]
    %v623 = vld [vmem:[%s3 + $0xc8] sm:$0xff]
    %v624 = vld [vmem:[%s3 + $0xd0] sm:$0xff]
    %v625 = vld [vmem:[%s3 + $0xd8] sm:$0xff]
    %v626 = vld [vmem:[%s3 + $0xe0] sm:$0xff]
    %v627 = vld [vmem:[%s3 + $0xe8] sm:$0xff]
    %v628 = vld [vmem:[%s3 + $0xf0] sm:$0xff]
    %v629 = vld [vmem:[%s3 + $0xf8] sm:$0xff]
    %v630 = vld [vmem:[%s4] sm:$0xff]
    %v631 = vld [vmem:[%s4 + $0x8] sm:$0xff]
    %v632 = vld [vmem:[%s4 + $0x10] sm:$0xff]
    %v633 = vld [vmem:[%s4 + $0x18] sm:$0xff]
    %v634 = vld [vmem:[%s4 + $0x20] sm:$0xff]
    %v635 = vld [vmem:[%s4 + $0x28] sm:$0xff]
    %v636 = vld [vmem:[%s4 + $0x30] sm:$0xff]
    %v637 = vld [vmem:[%s4 + $0x38] sm:$0xff]
    %v638 = vld [vmem:[%s4 + $0x40] sm:$0xff]
    %v639 = vld [vmem:[%s4 + $0x48] sm:$0xff]
    %v640 = vld [vmem:[%s4 + $0x50] sm:$0xff]
    %v641 = vld [vmem:[%s4 + $0x58] sm:$0xff]
    %v642 = vld [vmem:[%s4 + $0x60] sm:$0xff]
    %v643 = vld [vmem:[%s4 + $0x68] sm:$0xff]
    %v644 = vld [vmem:[%s4 + $0x70] sm:$0xff]
    %v645 = vld [vmem:[%s4 + $0x78] sm:$0xff]
    %v646 = vld [vmem:[%s4 + $0x80] sm:$0xff]
    %v647 = vld [vmem:[%s4 + $0x88] sm:$0xff]
    %v648 = vld [vmem:[%s4 + $0x90] sm:$0xff]
    %v649 = vld [vmem:[%s4 + $0x98] sm:$0xff]
    %v650 = vld [vmem:[%s4 + $0xa0] sm:$0xff]
    %v651 = vld [vmem:[%s4 + $0xa8] sm:$0xff]
    %v652 = vld [vmem:[%s4 + $0xb0] sm:$0xff]
    %v653 = vld [vmem:[%s4 + $0xb8] sm:$0xff]
    %v654 = vld [vmem:[%s4 + $0xc0] sm:$0xff]
    %v655 = vld [vmem:[%s4 + $0xc8] sm:$0xff]
    %v656 = vld [vmem:[%s4 + $0xd0] sm:$0xff]
    %v657 = vld [vmem:[%s4 + $0xd8] sm:$0xff]
    %v658 = vld [vmem:[%s4 + $0xe0] sm:$0xff]
    %v659 = vld [vmem:[%s4 + $0xe8] sm:$0xff]
    %v660 = vld [vmem:[%s4 + $0xf0] sm:$0xff]
    %v661 = vld [vmem:[%s4 + $0xf8] sm:$0xff]
    %663 = vset.pattern.permute.xlu0 0
    %664 = vperm.xlu0 %663, %v630
    %v665 = vpop.permute.xlu0 %664
    %668 = vset.pattern.permute.xlu0 0
    %669 = vperm.xlu0 %668, %v631
    %v670 = vpop.permute.xlu0 %669
    %673 = vset.pattern.permute.xlu0 0
    %674 = vperm.xlu0 %673, %v632
    %v675 = vpop.permute.xlu0 %674
    %678 = vset.pattern.permute.xlu0 0
    %679 = vperm.xlu0 %678, %v633
    %v680 = vpop.permute.xlu0 %679
    %683 = vset.pattern.permute.xlu0 0
    %684 = vperm.xlu0 %683, %v634
    %v685 = vpop.permute.xlu0 %684
    %688 = vset.pattern.permute.xlu0 0
    %689 = vperm.xlu0 %688, %v635
    %v690 = vpop.permute.xlu0 %689
    %693 = vset.pattern.permute.xlu0 0
    %694 = vperm.xlu0 %693, %v636
    %v695 = vpop.permute.xlu0 %694
    %698 = vset.pattern.permute.xlu0 0
    %699 = vperm.xlu0 %698, %v637
    %v700 = vpop.permute.xlu0 %699
    %703 = vset.pattern.permute.xlu0 0
    %704 = vperm.xlu0 %703, %v638
    %v705 = vpop.permute.xlu0 %704
    %708 = vset.pattern.permute.xlu0 0
    %709 = vperm.xlu0 %708, %v639
    %v710 = vpop.permute.xlu0 %709
    %713 = vset.pattern.permute.xlu0 0
    %714 = vperm.xlu0 %713, %v640
    %v715 = vpop.permute.xlu0 %714
    %718 = vset.pattern.permute.xlu0 0
    %719 = vperm.xlu0 %718, %v641
    %v720 = vpop.permute.xlu0 %719
    %723 = vset.pattern.permute.xlu0 0
    %724 = vperm.xlu0 %723, %v642
    %v725 = vpop.permute.xlu0 %724
    %728 = vset.pattern.permute.xlu0 0
    %729 = vperm.xlu0 %728, %v643
    %v730 = vpop.permute.xlu0 %729
    %733 = vset.pattern.permute.xlu0 0
    %734 = vperm.xlu0 %733, %v644
    %v735 = vpop.permute.xlu0 %734
    %738 = vset.pattern.permute.xlu0 0
    %739 = vperm.xlu0 %738, %v645
    %v740 = vpop.permute.xlu0 %739
    %743 = vset.pattern.permute.xlu0 0
    %744 = vperm.xlu0 %743, %v646
    %v745 = vpop.permute.xlu0 %744
    %748 = vset.pattern.permute.xlu0 0
    %749 = vperm.xlu0 %748, %v647
    %v750 = vpop.permute.xlu0 %749
    %753 = vset.pattern.permute.xlu0 0
    %754 = vperm.xlu0 %753, %v648
    %v755 = vpop.permute.xlu0 %754
    %758 = vset.pattern.permute.xlu0 0
    %759 = vperm.xlu0 %758, %v649
    %v760 = vpop.permute.xlu0 %759
    %763 = vset.pattern.permute.xlu0 0
    %764 = vperm.xlu0 %763, %v650
    %v765 = vpop.permute.xlu0 %764
    %768 = vset.pattern.permute.xlu0 0
    %769 = vperm.xlu0 %768, %v651
    %v770 = vpop.permute.xlu0 %769
    %773 = vset.pattern.permute.xlu0 0
    %774 = vperm.xlu0 %773, %v652
    %v775 = vpop.permute.xlu0 %774
    %778 = vset.pattern.permute.xlu0 0
    %779 = vperm.xlu0 %778, %v653
    %v780 = vpop.permute.xlu0 %779
    %783 = vset.pattern.permute.xlu0 0
    %784 = vperm.xlu0 %783, %v654
    %v785 = vpop.permute.xlu0 %784
    %788 = vset.pattern.permute.xlu0 0
    %789 = vperm.xlu0 %788, %v655
    %v790 = vpop.permute.xlu0 %789
    %793 = vset.pattern.permute.xlu0 0
    %794 = vperm.xlu0 %793, %v656
    %v795 = vpop.permute.xlu0 %794
    %798 = vset.pattern.permute.xlu0 0
    %799 = vperm.xlu0 %798, %v657
    %v800 = vpop.permute.xlu0 %799
    %803 = vset.pattern.permute.xlu0 0
    %804 = vperm.xlu0 %803, %v658
    %v805 = vpop.permute.xlu0 %804
    %808 = vset.pattern.permute.xlu0 0
    %809 = vperm.xlu0 %808, %v659
    %v810 = vpop.permute.xlu0 %809
    %813 = vset.pattern.permute.xlu0 0
    %814 = vperm.xlu0 %813, %v660
    %v815 = vpop.permute.xlu0 %814
    %818 = vset.pattern.permute.xlu0 0
    %819 = vperm.xlu0 %818, %v661
    %v820 = vpop.permute.xlu0 %819
    %v854 = vunpack.c.l.b16 %v598
    %v855 = vunpack.c.h.b16 %v598
    %v856 = vunpack.c.l.b16 %v599
    %v857 = vunpack.c.h.b16 %v599
    %v858 = vunpack.c.l.b16 %v600
    %v859 = vunpack.c.h.b16 %v600
    %v860 = vunpack.c.l.b16 %v601
    %v861 = vunpack.c.h.b16 %v601
    %v862 = vunpack.c.l.b16 %v602
    %v863 = vunpack.c.h.b16 %v602
    %v864 = vunpack.c.l.b16 %v603
    %v865 = vunpack.c.h.b16 %v603
    %v866 = vunpack.c.l.b16 %v604
    %v867 = vunpack.c.h.b16 %v604
    %v868 = vunpack.c.l.b16 %v605
    %v869 = vunpack.c.h.b16 %v605
    %v870 = vunpack.c.l.b16 %v606
    %v871 = vunpack.c.h.b16 %v606
    %v872 = vunpack.c.l.b16 %v607
    %v873 = vunpack.c.h.b16 %v607
    %v874 = vunpack.c.l.b16 %v608
    %v875 = vunpack.c.h.b16 %v608
    %v876 = vunpack.c.l.b16 %v609
    %v877 = vunpack.c.h.b16 %v609
    %v878 = vunpack.c.l.b16 %v610
    %v879 = vunpack.c.h.b16 %v610
    %v880 = vunpack.c.l.b16 %v611
    %v881 = vunpack.c.h.b16 %v611
    %v882 = vunpack.c.l.b16 %v612
    %v883 = vunpack.c.h.b16 %v612
    %v884 = vunpack.c.l.b16 %v613
    %v885 = vunpack.c.h.b16 %v613
    %v886 = vunpack.c.l.b16 %v614
    %v887 = vunpack.c.h.b16 %v614
    %v888 = vunpack.c.l.b16 %v615
    %v889 = vunpack.c.h.b16 %v615
    %v890 = vunpack.c.l.b16 %v616
    %v891 = vunpack.c.h.b16 %v616
    %v892 = vunpack.c.l.b16 %v617
    %v893 = vunpack.c.h.b16 %v617
    %v894 = vunpack.c.l.b16 %v618
    %v895 = vunpack.c.h.b16 %v618
    %v896 = vunpack.c.l.b16 %v619
    %v897 = vunpack.c.h.b16 %v619
    %v898 = vunpack.c.l.b16 %v620
    %v899 = vunpack.c.h.b16 %v620
    %v900 = vunpack.c.l.b16 %v621
    %v901 = vunpack.c.h.b16 %v621
    %v902 = vunpack.c.l.b16 %v622
    %v903 = vunpack.c.h.b16 %v622
    %v904 = vunpack.c.l.b16 %v623
    %v905 = vunpack.c.h.b16 %v623
    %v906 = vunpack.c.l.b16 %v624
    %v907 = vunpack.c.h.b16 %v624
    %v908 = vunpack.c.l.b16 %v625
    %v909 = vunpack.c.h.b16 %v625
    %v910 = vunpack.c.l.b16 %v626
    %v911 = vunpack.c.h.b16 %v626
    %v912 = vunpack.c.l.b16 %v627
    %v913 = vunpack.c.h.b16 %v627
    %v914 = vunpack.c.l.b16 %v628
    %v915 = vunpack.c.h.b16 %v628
    %v916 = vunpack.c.l.b16 %v629
    %v917 = vunpack.c.h.b16 %v629
    %v918 = vpack.c.b16 %v856, %v854
    %v919 = vpack.c.b16 %v857, %v855
    %v920 = vpack.c.b16 %v860, %v858
    %v921 = vpack.c.b16 %v861, %v859
    %v922 = vpack.c.b16 %v864, %v862
    %v923 = vpack.c.b16 %v865, %v863
    %v924 = vpack.c.b16 %v868, %v866
    %v925 = vpack.c.b16 %v869, %v867
    %v926 = vpack.c.b16 %v872, %v870
    %v927 = vpack.c.b16 %v873, %v871
    %v928 = vpack.c.b16 %v876, %v874
    %v929 = vpack.c.b16 %v877, %v875
    %v930 = vpack.c.b16 %v880, %v878
    %v931 = vpack.c.b16 %v881, %v879
    %v932 = vpack.c.b16 %v884, %v882
    %v933 = vpack.c.b16 %v885, %v883
    %v934 = vpack.c.b16 %v888, %v886
    %v935 = vpack.c.b16 %v889, %v887
    %v936 = vpack.c.b16 %v892, %v890
    %v937 = vpack.c.b16 %v893, %v891
    %v938 = vpack.c.b16 %v896, %v894
    %v939 = vpack.c.b16 %v897, %v895
    %v940 = vpack.c.b16 %v900, %v898
    %v941 = vpack.c.b16 %v901, %v899
    %v942 = vpack.c.b16 %v904, %v902
    %v943 = vpack.c.b16 %v905, %v903
    %v944 = vpack.c.b16 %v908, %v906
    %v945 = vpack.c.b16 %v909, %v907
    %v946 = vpack.c.b16 %v912, %v910
    %v947 = vpack.c.b16 %v913, %v911
    %v948 = vpack.c.b16 %v916, %v914
    %v949 = vpack.c.b16 %v917, %v915
    %982 = vmatprep.subr.bf16.mxu0 0
    %983 = vmatpush1.bf16.msra.mxu0 %v589
    %984 = vmatprep.subr.bf16.mxu0 0
    %985 = vmatpush1.bf16.msra.mxu0 %v588
    %986 = vmatprep.subr.bf16.mxu0 0
    %987 = vmatpush1.bf16.msra.mxu0 %v587
    %988 = vmatprep.subr.bf16.mxu0 0
    %989 = vmatpush1.bf16.msra.mxu0 %v586
    %990 = vmatprep.subr.bf16.mxu0 0
    %991 = vmatpush1.bf16.msra.mxu0 %v585
    %992 = vmatprep.subr.bf16.mxu0 0
    %993 = vmatpush1.bf16.msra.mxu0 %v584
    %994 = vmatprep.subr.bf16.mxu0 0
    %995 = vmatpush1.bf16.msra.mxu0 %v583
    %996 = vmatprep.subr.bf16.mxu0 0
    %997 = vmatpush1.bf16.msra.mxu0 %v582
    %998 = vmatprep.subr.bf16.mxu0 0
    %999 = vmatpush2.bf16.msra.mxu0 %v597
    %1000 = vmatprep.subr.bf16.mxu0 0
    %1001 = vmatpush2.bf16.msra.mxu0 %v596
    %1002 = vmatprep.subr.bf16.mxu0 0
    %1003 = vmatpush2.bf16.msra.mxu0 %v595
    %1004 = vmatprep.subr.bf16.mxu0 0
    %1005 = vmatpush2.bf16.msra.mxu0 %v594
    %1006 = vmatprep.subr.bf16.mxu0 0
    %1007 = vmatpush2.bf16.msra.mxu0 %v593
    %1008 = vmatprep.subr.bf16.mxu0 0
    %1009 = vmatpush2.bf16.msra.mxu0 %v592
    %1010 = vmatprep.subr.bf16.mxu0 0
    %1011 = vmatpush2.bf16.msra.mxu0 %v591
    %1012 = vmatprep.subr.bf16.mxu0 0
    %1013 = vmatpush2.bf16.msra.mxu0 %v590
    %1014 = vmatprep.mubr.bf16.mxu0 %v919
    %1015 = vmatmul.mubr.bf16.gmra.mxu0 %v918
    %v1016 = vpop.f32.mrf.mxu0
    %v1017 = vadd.f32 %v665, %v1016
    %v1018 = vpop.f32.mrf.mxu0
    %v1019 = vpop.f32.mrf.mxu0
    %v1020 = vadd.f32 %v670, %v1019
    %v1021 = vpop.f32.mrf.mxu0
    %1022 = vmatprep.mubr.bf16.mxu0 %v921
    %1023 = vmatmul.mubr.bf16.gmra.mxu0 %v920
    %v1024 = vpop.f32.mrf.mxu0
    %v1025 = vadd.f32 %v675, %v1024
    %v1026 = vpop.f32.mrf.mxu0
    %v1027 = vpop.f32.mrf.mxu0
    %v1028 = vadd.f32 %v680, %v1027
    %v1029 = vpop.f32.mrf.mxu0
    %1030 = vmatprep.mubr.bf16.mxu0 %v923
    %1031 = vmatmul.mubr.bf16.gmra.mxu0 %v922
    %v1032 = vpop.f32.mrf.mxu0
    %v1033 = vadd.f32 %v685, %v1032
    %v1034 = vpop.f32.mrf.mxu0
    %v1035 = vpop.f32.mrf.mxu0
    %v1036 = vadd.f32 %v690, %v1035
    %v1037 = vpop.f32.mrf.mxu0
    %1038 = vmatprep.mubr.bf16.mxu0 %v925
    %1039 = vmatmul.mubr.bf16.gmra.mxu0 %v924
    %v1040 = vpop.f32.mrf.mxu0
    %v1041 = vadd.f32 %v695, %v1040
    %v1042 = vpop.f32.mrf.mxu0
    %v1043 = vpop.f32.mrf.mxu0
    %v1044 = vadd.f32 %v700, %v1043
    %v1045 = vpop.f32.mrf.mxu0
    %1046 = vmatprep.mubr.bf16.mxu0 %v927
    %1047 = vmatmul.mubr.bf16.gmra.mxu0 %v926
    %v1048 = vpop.f32.mrf.mxu0
    %v1049 = vadd.f32 %v705, %v1048
    %v1050 = vpop.f32.mrf.mxu0
    %v1051 = vpop.f32.mrf.mxu0
    %v1052 = vadd.f32 %v710, %v1051
    %v1053 = vpop.f32.mrf.mxu0
    %1054 = vmatprep.mubr.bf16.mxu0 %v929
    %1055 = vmatmul.mubr.bf16.gmra.mxu0 %v928
    %v1056 = vpop.f32.mrf.mxu0
    %v1057 = vadd.f32 %v715, %v1056
    %v1058 = vpop.f32.mrf.mxu0
    %v1059 = vpop.f32.mrf.mxu0
    %v1060 = vadd.f32 %v720, %v1059
    %v1061 = vpop.f32.mrf.mxu0
    %1062 = vmatprep.mubr.bf16.mxu0 %v931
    %1063 = vmatmul.mubr.bf16.gmra.mxu0 %v930
    %v1064 = vpop.f32.mrf.mxu0
    %v1065 = vadd.f32 %v725, %v1064
    %v1066 = vpop.f32.mrf.mxu0
    %v1067 = vpop.f32.mrf.mxu0
    %v1068 = vadd.f32 %v730, %v1067
    %v1069 = vpop.f32.mrf.mxu0
    %1070 = vmatprep.mubr.bf16.mxu0 %v933
    %1071 = vmatmul.mubr.bf16.gmra.mxu0 %v932
    %v1072 = vpop.f32.mrf.mxu0
    %v1073 = vadd.f32 %v735, %v1072
    %v1074 = vpop.f32.mrf.mxu0
    %v1075 = vpop.f32.mrf.mxu0
    %v1076 = vadd.f32 %v740, %v1075
    %v1077 = vpop.f32.mrf.mxu0
    %1078 = vmatprep.mubr.bf16.mxu0 %v935
    %1079 = vmatmul.mubr.bf16.gmra.mxu0 %v934
    %v1080 = vpop.f32.mrf.mxu0
    %v1081 = vadd.f32 %v745, %v1080
    %v1082 = vpop.f32.mrf.mxu0
    %v1083 = vpop.f32.mrf.mxu0
    %v1084 = vadd.f32 %v750, %v1083
    %v1085 = vpop.f32.mrf.mxu0
    %1086 = vmatprep.mubr.bf16.mxu0 %v937
    %1087 = vmatmul.mubr.bf16.gmra.mxu0 %v936
    %v1088 = vpop.f32.mrf.mxu0
    %v1089 = vadd.f32 %v755, %v1088
    %v1090 = vpop.f32.mrf.mxu0
    %v1091 = vpop.f32.mrf.mxu0
    %v1092 = vadd.f32 %v760, %v1091
    %v1093 = vpop.f32.mrf.mxu0
    %1094 = vmatprep.mubr.bf16.mxu0 %v939
    %1095 = vmatmul.mubr.bf16.gmra.mxu0 %v938
    %v1096 = vpop.f32.mrf.mxu0
    %v1097 = vadd.f32 %v765, %v1096
    %v1098 = vpop.f32.mrf.mxu0
    %v1099 = vpop.f32.mrf.mxu0
    %v1100 = vadd.f32 %v770, %v1099
    %v1101 = vpop.f32.mrf.mxu0
    %1102 = vmatprep.mubr.bf16.mxu0 %v941
    %1103 = vmatmul.mubr.bf16.gmra.mxu0 %v940
    %v1104 = vpop.f32.mrf.mxu0
    %v1105 = vadd.f32 %v775, %v1104
    %v1106 = vpop.f32.mrf.mxu0
    %v1107 = vpop.f32.mrf.mxu0
    %v1108 = vadd.f32 %v780, %v1107
    %v1109 = vpop.f32.mrf.mxu0
    %1110 = vmatprep.mubr.bf16.mxu0 %v943
    %1111 = vmatmul.mubr.bf16.gmra.mxu0 %v942
    %v1112 = vpop.f32.mrf.mxu0
    %v1113 = vadd.f32 %v785, %v1112
    %v1114 = vpop.f32.mrf.mxu0
    %v1115 = vpop.f32.mrf.mxu0
    %v1116 = vadd.f32 %v790, %v1115
    %v1117 = vpop.f32.mrf.mxu0
    %1118 = vmatprep.mubr.bf16.mxu0 %v945
    %1119 = vmatmul.mubr.bf16.gmra.mxu0 %v944
    %v1120 = vpop.f32.mrf.mxu0
    %v1121 = vadd.f32 %v795, %v1120
    %v1122 = vpop.f32.mrf.mxu0
    %v1123 = vpop.f32.mrf.mxu0
    %v1124 = vadd.f32 %v800, %v1123
    %v1125 = vpop.f32.mrf.mxu0
    %1126 = vmatprep.mubr.bf16.mxu0 %v947
    %1127 = vmatmul.mubr.bf16.gmra.mxu0 %v946
    %v1128 = vpop.f32.mrf.mxu0
    %v1129 = vadd.f32 %v805, %v1128
    %v1130 = vpop.f32.mrf.mxu0
    %v1131 = vpop.f32.mrf.mxu0
    %v1132 = vadd.f32 %v810, %v1131
    %v1133 = vpop.f32.mrf.mxu0
    %1134 = vmatprep.mubr.bf16.mxu0 %v949
    %1135 = vmatmul.mubr.bf16.gmra.mxu0 %v948
    %v1136 = vpop.f32.mrf.mxu0
    %v1137 = vadd.f32 %v815, %v1136
    %v1138 = vpop.f32.mrf.mxu0
    %v1139 = vpop.f32.mrf.mxu0
    %v1140 = vadd.f32 %v820, %v1139
    %v1141 = vpop.f32.mrf.mxu0
    %1142 = vdwg.mxu0
    %v1143 = vmax.f32 %v1017, 0.0
    %v1144 = vmax.f32 %v1020, 0.0
    %v1145 = vmax.f32 %v1025, 0.0
    %v1146 = vmax.f32 %v1028, 0.0
    %v1147 = vmax.f32 %v1033, 0.0
    %v1148 = vmax.f32 %v1036, 0.0
    %v1149 = vmax.f32 %v1041, 0.0
    %v1150 = vmax.f32 %v1044, 0.0
    %v1151 = vmax.f32 %v1049, 0.0
    %v1152 = vmax.f32 %v1052, 0.0
    %v1153 = vmax.f32 %v1057, 0.0
    %v1154 = vmax.f32 %v1060, 0.0
    %v1155 = vmax.f32 %v1065, 0.0
    %v1156 = vmax.f32 %v1068, 0.0
    %v1157 = vmax.f32 %v1073, 0.0
    %v1158 = vmax.f32 %v1076, 0.0
    %v1159 = vmax.f32 %v1081, 0.0
    %v1160 = vmax.f32 %v1084, 0.0
    %v1161 = vmax.f32 %v1089, 0.0
    %v1162 = vmax.f32 %v1092, 0.0
    %v1163 = vmax.f32 %v1097, 0.0
    %v1164 = vmax.f32 %v1100, 0.0
    %v1165 = vmax.f32 %v1105, 0.0
    %v1166 = vmax.f32 %v1108, 0.0
    %v1167 = vmax.f32 %v1113, 0.0
    %v1168 = vmax.f32 %v1116, 0.0
    %v1169 = vmax.f32 %v1121, 0.0
    %v1170 = vmax.f32 %v1124, 0.0
    %v1171 = vmax.f32 %v1129, 0.0
    %v1172 = vmax.f32 %v1132, 0.0
    %v1173 = vmax.f32 %v1137, 0.0
    %v1174 = vmax.f32 %v1140, 0.0
    %v1175 = vpack.c.bf16 %v1144, %v1143
    %v1176 = vpack.c.bf16 %v1146, %v1145
    %v1177 = vpack.c.bf16 %v1148, %v1147
    %v1178 = vpack.c.bf16 %v1150, %v1149
    %v1179 = vpack.c.bf16 %v1152, %v1151
    %v1180 = vpack.c.bf16 %v1154, %v1153
    %v1181 = vpack.c.bf16 %v1156, %v1155
    %v1182 = vpack.c.bf16 %v1158, %v1157
    %v1183 = vpack.c.bf16 %v1160, %v1159
    %v1184 = vpack.c.bf16 %v1162, %v1161
    %v1185 = vpack.c.bf16 %v1164, %v1163
    %v1186 = vpack.c.bf16 %v1166, %v1165
    %v1187 = vpack.c.bf16 %v1168, %v1167
    %v1188 = vpack.c.bf16 %v1170, %v1169
    %v1189 = vpack.c.bf16 %v1172, %v1171
    %v1190 = vpack.c.bf16 %v1174, %v1173
    %v1191 = vld [vmem:[%s5] sm:$0xff]
    %v1192 = vld [vmem:[%s6] sm:$0xff]
    %1194 = vset.pattern.permute.xlu0 0
    %1195 = vperm.xlu0 %1194, %v1192
    %v1196 = vpop.permute.xlu0 %1195
    %v1199 = vunpack.c.l.b16 %v1191
    %v1200 = vunpack.c.h.b16 %v1191
    %v1201 = vpack.c.b16 %v1199, %v1199
    %v1202 = vpack.c.b16 %v1200, %v1200
    %1205 = vmatprep.subr.bf16.mxu0 0
    %1206 = vmatpush1.bf16.msra.mxu0 %v1182
    %1207 = vmatprep.subr.bf16.mxu0 0
    %1208 = vmatpush1.bf16.msra.mxu0 %v1181
    %1209 = vmatprep.subr.bf16.mxu0 0
    %1210 = vmatpush1.bf16.msra.mxu0 %v1180
    %1211 = vmatprep.subr.bf16.mxu0 0
    %1212 = vmatpush1.bf16.msra.mxu0 %v1179
    %1213 = vmatprep.subr.bf16.mxu0 0
    %1214 = vmatpush1.bf16.msra.mxu0 %v1178
    %1215 = vmatprep.subr.bf16.mxu0 0
    %1216 = vmatpush1.bf16.msra.mxu0 %v1177
    %1217 = vmatprep.subr.bf16.mxu0 0
    %1218 = vmatpush1.bf16.msra.mxu0 %v1176
    %1219 = vmatprep.subr.bf16.mxu0 0
    %1220 = vmatpush1.bf16.msra.mxu0 %v1175
    %1221 = vmatprep.subr.bf16.mxu0 0
    %1222 = vmatpush2.bf16.msra.mxu0 %v1190
    %1223 = vmatprep.subr.bf16.mxu0 0
    %1224 = vmatpush2.bf16.msra.mxu0 %v1189
    %1225 = vmatprep.subr.bf16.mxu0 0
    %1226 = vmatpush2.bf16.msra.mxu0 %v1188
    %1227 = vmatprep.subr.bf16.mxu0 0
    %1228 = vmatpush2.bf16.msra.mxu0 %v1187
    %1229 = vmatprep.subr.bf16.mxu0 0
    %1230 = vmatpush2.bf16.msra.mxu0 %v1186
    %1231 = vmatprep.subr.bf16.mxu0 0
    %1232 = vmatpush2.bf16.msra.mxu0 %v1185
    %1233 = vmatprep.subr.bf16.mxu0 0
    %1234 = vmatpush2.bf16.msra.mxu0 %v1184
    %1235 = vmatprep.subr.bf16.mxu0 0
    %1236 = vmatpush2.bf16.msra.mxu0 %v1183
    %1237 = vmatprep.mubr.bf16.mxu0 %v1202
    %1238 = vmatmul.mubr.bf16.gmra.mxu0 %v1201
    %v1239 = vpop.f32.mrf.mxu0
    %v1240 = vadd.f32 %v1196, %v1239
    %v1241 = vpop.f32.mrf.mxu0
    %v1242 = vpop.f32.mrf.mxu0
    %v1243 = vpop.f32.mrf.mxu0
    %1244 = vdwg.mxu0
    %vm1245 = vcmask 64512
    %1246 = vst.msk [vmem:[#allocation2] sm:$0xff] %vm1245, %v1240
    // Predicated region
    $region30: #{tpu_custom_call.1} parent=1 // pred_check
      _
    $region31: #{tpu_custom_call.1} parent=1 // pred_check_branch
      %1248 = sbr.rel (0) target = $region33
    $region32: #{tpu_custom_call.1} parent=1 // pred_region
      %s1250 = ssub.s32 128, 128
      %1251 = vsyncadd [#allocation3], %s1250
      %s1253 = sshll.u32 [#allocation2], 4
      %s1254 = int_to_ptr.vmem [resolvable:$true] %s1253
      %1256 = dma.vmem_to_hbm [thread:$0]  %s1254, 128, %s7, [#allocation3]
    $region33: #{tpu_custom_call.1} parent=1 // pred_fallthru
      _
    // Predicated region
    $region34: #{tpu_custom_call.1} parent=1 // pred_check
      _
    $region35: #{tpu_custom_call.1} parent=1 // pred_check_branch
      %1258 = sbr.rel (0) target = $region37
    $region36: #{tpu_custom_call.1} parent=1 // pred_region
      %1259 = dma.done [#allocation3], 128
    $region37: #{tpu_custom_call.1} parent=1 // pred_fallthru
      _
    %1260 = vsyncpa [#allocation3], 1

</llo_original>
